<compile_context>
chip_gen: v7x
topology: tpu7x:2x2x1
jax: 0.10.0
libtpu: 0.0.40
codegen_flags: <defaults>
</compile_context>

<pallas_src>
import functools

import jax
import jax.numpy as jnp
import numpy as np
from jax import lax
from jax.experimental import pallas as pl
from jax.experimental.pallas import tpu as pltpu


_LN_EPS = 1e-12
# Word tables at or below this size take the "whole table resident in VMEM"
# fast path (no manual DMA gather).
_SMALL_TABLE_BYTES = 1 << 20


# ----------------------------------------------------------------------------
# Shared math: (word + pos) then LayerNorm over dim (PyTorch semantics:
# biased variance, eps added to var inside rsqrt).
# ----------------------------------------------------------------------------
def _add_layernorm(w, p, gamma, beta, out_dtype):
    x = w.astype(jnp.float32) + p.astype(jnp.float32)
    mean = jnp.mean(x, axis=-1, keepdims=True)
    centered = x - mean
    var = jnp.mean(centered * centered, axis=-1, keepdims=True)
    y = centered * lax.rsqrt(var + _LN_EPS)
    y = y * gamma.astype(jnp.float32) + beta.astype(jnp.float32)
    return y.astype(out_dtype)


# ----------------------------------------------------------------------------
# General path: word table stays in HBM, rows gathered via double-buffered DMA
# ----------------------------------------------------------------------------
def _embeddings_gather_kernel(ids_ref,      # SMEM (B*S,) int32 (scalar prefetch)
                              pos_ref,      # VMEM (S, dim)  resident positions
                              gamma_ref,    # VMEM (1, dim)
                              beta_ref,     # VMEM (1, dim)
                              word_hbm,     # HBM  (vocab, dim) raw ref (pl.ANY)
                              out_ref,      # VMEM (1, T, dim)
                              wbuf,         # VMEM (2, T, dim) gathered rows
                              sem,          # DMA sems (2,)
                              *, token_tile, seq_len):
    b = pl.program_id(0)
    j = pl.program_id(1)
    num_j = pl.num_programs(1)
    slot = j % 2

    unroll = True if token_tile <= 64 else 8

    def issue_gather(tile_idx, sl):
        base = b * seq_len + tile_idx * token_tile

        def body(t, carry):
            tok = ids_ref[base + t]
            pltpu.make_async_copy(
                word_hbm.at[pl.ds(tok, 1), :],
                wbuf.at[sl, pl.ds(t, 1), :],
                sem.at[sl],
            ).start()
            return carry

        lax.fori_loop(0, token_tile, body, 0, unroll=unroll)

    # Prime the pipeline at the first sequence tile of each batch row.
    @pl.when(j == 0)
    def _():
        issue_gather(0, 0)

    # Prefetch the next tile's rows into the other slot (same batch row only,
    # so this stays correct under megacore batch sharding).
    @pl.when(j + 1 < num_j)
    def _():
        issue_gather(j + 1, 1 - slot)

    # Single combined wait: every copy into sem[slot] was one (1, dim) row of
    # wbuf's dtype, and DMA semaphores count bytes, so one (T, dim) descriptor
    # waits for all token_tile row gathers at once.
    pltpu.make_async_copy(wbuf.at[slot], wbuf.at[slot], sem.at[slot]).wait()

    pos_off = pl.multiple_of(j * token_tile, token_tile)
    p = pos_ref[pl.ds(pos_off, token_tile), :]
    out_ref[0] = _add_layernorm(wbuf[slot], p, gamma_ref[...], beta_ref[...],
                                out_ref.dtype)


# ----------------------------------------------------------------------------
# Small-table fast path: whole word table resident in VMEM, in-kernel gather
# ----------------------------------------------------------------------------
def _embeddings_small_table_kernel(ids_ref,    # SMEM (B*S,) int32
                                   word_ref,   # VMEM (vocab, dim) whole table
                                   pos_ref,    # VMEM (S, dim)
                                   gamma_ref,  # VMEM (1, dim)
                                   beta_ref,   # VMEM (1, dim)
                                   out_ref,    # VMEM (1, T, dim)
                                   wrow,       # VMEM (T, dim) gather scratch
                                   *, token_tile, seq_len):
    b = pl.program_id(0)
    j = pl.program_id(1)
    base = b * seq_len + j * token_tile

    # Static unroll: T dynamic-row loads from the resident table.
    for t in range(token_tile):
        tok = ids_ref[base + t]
        wrow[pl.ds(t, 1), :] = word_ref[pl.ds(tok, 1), :]

    pos_off = pl.multiple_of(j * token_tile, token_tile)
    p = pos_ref[pl.ds(pos_off, token_tile), :]
    out_ref[0] = _add_layernorm(wrow[...], p, gamma_ref[...], beta_ref[...],
                                out_ref.dtype)


# ----------------------------------------------------------------------------
# Wrapper
# ----------------------------------------------------------------------------
def _pick_token_tile(seq_len, max_tile=512, multiple=8):
    """Largest multiple of `multiple` dividing seq_len, capped at max_tile."""
    best = None
    for t in range(multiple, min(seq_len, max_tile) + 1, multiple):
        if seq_len % t == 0:
            best = t
    if best is None:
        raise ValueError(
            f"seq_len={seq_len} needs a divisor that is a multiple of {multiple}")
    return best


@functools.partial(jax.jit,
                   static_argnames=("token_tile", "force_gather", "out_dtype"))
def distilbert_embeddings(input_ids, word_table, pos_table, gamma, beta, *,
                          token_tile=None, force_gather=False,
                          out_dtype=jnp.float32):
    """input_ids: (B, S) int32 -> (B, S, dim) embeddings (word + pos, LN)."""
    bsz, seq_len = input_ids.shape
    vocab, dim = word_table.shape
    assert pos_table.shape[0] >= seq_len and pos_table.shape[1] == dim

    out_dtype = jnp.dtype(out_dtype)
    min_multiple = 16 if out_dtype.itemsize < 4 else 8
    if token_tile is None:
        token_tile = _pick_token_tile(seq_len, multiple=min_multiple)
    assert seq_len % token_tile == 0 and token_tile % min_multiple == 0
    num_seq_tiles = seq_len // token_tile

    flat_ids = input_ids.reshape(bsz * seq_len).astype(jnp.int32)
    pos_rows = pos_table[:seq_len]          # VMEM-resident, reused by all rows
    gamma2d = gamma.reshape(1, dim)
    beta2d = beta.reshape(1, dim)

    out_shape = jax.ShapeDtypeStruct((bsz, seq_len, dim), out_dtype)
    out_spec = pl.BlockSpec((1, token_tile, dim), lambda b, j, ids: (b, j, 0))
    vmem_spec = pl.BlockSpec(memory_space=pltpu.MemorySpace.VMEM)

    table_bytes = vocab * dim * word_table.dtype.itemsize
    use_small_path = (not force_gather) and table_bytes <= _SMALL_TABLE_BYTES

    common_vmem = (2 * token_tile * dim * out_dtype.itemsize        # out dbl-buf
                   + seq_len * dim * pos_rows.dtype.itemsize        # positions
                   + 2 * dim * 4)                                   # gamma/beta

    if use_small_path:
        need = common_vmem + table_bytes \
            + token_tile * dim * word_table.dtype.itemsize
        grid_spec = pltpu.PrefetchScalarGridSpec(
            num_scalar_prefetch=1,
            grid=(bsz, num_seq_tiles),
            in_specs=[vmem_spec, vmem_spec, vmem_spec, vmem_spec],
            out_specs=out_spec,
            scratch_shapes=[pltpu.VMEM((token_tile, dim), word_table.dtype)],
        )
        kernel = functools.partial(_embeddings_small_table_kernel,
                                   token_tile=token_tile, seq_len=seq_len)
        operands = (flat_ids, word_table, pos_rows, gamma2d, beta2d)
        dim_sem = ("parallel", "parallel")
    else:
        need = common_vmem + 2 * token_tile * dim * word_table.dtype.itemsize
        grid_spec = pltpu.PrefetchScalarGridSpec(
            num_scalar_prefetch=1,
            grid=(bsz, num_seq_tiles),
            in_specs=[vmem_spec, vmem_spec, vmem_spec,
                      pl.BlockSpec(memory_space=pl.ANY)],
            out_specs=out_spec,
            scratch_shapes=[pltpu.VMEM((2, token_tile, dim), word_table.dtype),
                            pltpu.SemaphoreType.DMA((2,))],
        )
        kernel = functools.partial(_embeddings_gather_kernel,
                                   token_tile=token_tile, seq_len=seq_len)
        operands = (flat_ids, pos_rows, gamma2d, beta2d, word_table)
        dim_sem = ("parallel", "arbitrary")

    vmem_limit = int(min(max(2 * need, 32 << 20), 100 << 20))

    return pl.pallas_call(
        kernel,
        out_shape=out_shape,
        grid_spec=grid_spec,
        compiler_params=pltpu.CompilerParams(
            dimension_semantics=dim_sem,
            vmem_limit_bytes=vmem_limit),
    )(*operands)


# ----------------------------------------------------------------------------
# Deterministic parameter construction (mirrors Embeddings.__init__)
# ----------------------------------------------------------------------------
def make_sinusoidal_embeddings(n_pos, dim):
    """Same math as create_sinusoidal_embeddings in the PyTorch reference."""
    position_enc = np.array(
        [[pos / np.power(10000, 2 * (j // 2) / dim) for j in range(dim)]
         for pos in range(n_pos)])
    out = np.zeros((n_pos, dim), dtype=np.float32)
    out[:, 0::2] = np.sin(position_enc[:, 0::2])
    out[:, 1::2] = np.cos(position_enc[:, 1::2])
    return jnp.asarray(out)


def pure_jax_reference(input_ids, word_table, pos_table, gamma, beta):
    bsz, s = input_ids.shape
    w = word_table[input_ids]                       # (B, S, dim)
    p = pos_table[jnp.arange(s)][None, :, :]        # (1, S, dim)
    x = w.astype(jnp.float32) + p.astype(jnp.float32)
    mean = jnp.mean(x, axis=-1, keepdims=True)
    var = jnp.mean((x - mean) ** 2, axis=-1, keepdims=True)
    return (x - mean) * lax.rsqrt(var + _LN_EPS) * gamma + beta


if __name__ == "__main__":
    # Small synthetic DistilBERT-like config.
    vocab_size = 64
    max_position_embeddings = 64
    dim = 128
    pad_token_id = 0
    batch, seq_len = 2, 16

    key = jax.random.PRNGKey(0)
    k_word, k_ids = jax.random.split(key)

    # nn.Embedding default init ~ N(0, 1); padding_idx row zeroed.
    word_table = jax.random.normal(k_word, (vocab_size, dim), dtype=jnp.float32)
    word_table = word_table.at[pad_token_id].set(0.0)

    # sinusoidal_pos_embds = True branch.
    pos_table = make_sinusoidal_embeddings(max_position_embeddings, dim)

    # nn.LayerNorm default init.
    gamma = jnp.ones((dim,), dtype=jnp.float32)
    beta = jnp.zeros((dim,), dtype=jnp.float32)

    input_ids = jax.random.randint(k_ids, (batch, seq_len), 0, vocab_size,
                                   dtype=jnp.int32)

    ref = pure_jax_reference(input_ids, word_table, pos_table, gamma, beta)

    # 1) General HBM row-gather path (forced), token_tile=8 -> grid (2, 2):
    #    exercises the double-buffered prefetch + combined wait.
    out_gather = distilbert_embeddings(input_ids, word_table, pos_table, gamma,
                                       beta, token_tile=8, force_gather=True)
    out_gather = jax.block_until_ready(out_gather)
    np.testing.assert_allclose(np.asarray(out_gather), np.asarray(ref),
                               rtol=1e-5, atol=1e-5)

    # 2) Small-table fast path (whole word table resident in VMEM).
    out_fast = distilbert_embeddings(input_ids, word_table, pos_table, gamma,
                                     beta)
    out_fast = jax.block_until_ready(out_fast)
    np.testing.assert_allclose(np.asarray(out_fast), np.asarray(ref),
                               rtol=1e-5, atol=1e-5)

    assert out_gather.shape == (batch, seq_len, dim)
    assert out_fast.shape == (batch, seq_len, dim)

    print("KERNEL_OK")
</pallas_src>

<mosaic_0001>
module attributes {stable_mosaic.version = 11 : i64} {
  func.func @_embeddings_gather_kernel(%arg0: i32, %arg1: i32, %arg2: memref<32xi32, #tpu.memory_space<smem>>, %arg3: memref<16x128xf32, #tpu.memory_space<vmem>>, %arg4: memref<1x128xf32, #tpu.memory_space<vmem>>, %arg5: memref<1x128xf32, #tpu.memory_space<vmem>>, %arg6: memref<64x128xf32, #tpu.memory_space<any>>, %arg7: memref<1x8x128xf32, #tpu.memory_space<vmem>>, %arg8: memref<2x8x128xf32, #tpu.memory_space<vmem>>, %arg9: memref<2x!tpu.dma_semaphore, #tpu.memory_space<semaphore_mem>>) attributes {dimension_semantics = [#tpu.dimension_semantics<parallel>, #tpu.dimension_semantics<arbitrary>], iteration_bounds = array<i64: 2, 2>, scalar_prefetch = 1 : i64, scratch_operands = 2 : i64, tpu.core_type = #tpu.core_type<tc>, window_params = [{pipeline_mode = #tpu.pipeline_mode<synchronous>, transform_indices = @transform_0, window_bounds = array<i64: 16, 128>}, {pipeline_mode = #tpu.pipeline_mode<synchronous>, transform_indices = @transform_1, window_bounds = array<i64: 1, 128>}, {pipeline_mode = #tpu.pipeline_mode<synchronous>, transform_indices = @transform_2, window_bounds = array<i64: 1, 128>}, {}, {transform_indices = @transform_4, window_bounds = array<i64: 1, 8, 128>}]} {
    %c2_i32 = arith.constant 2 : i32
    %c0_i32 = arith.constant 0 : i32
    %0 = arith.cmpi eq, %c2_i32, %c0_i32 : i32
    %c1_i32 = arith.constant 1 : i32
    %1 = arith.select %0, %c1_i32, %c2_i32 : i32
    %2 = arith.remsi %arg1, %1 : i32
    %c0_i32_0 = arith.constant 0 : i32
    %3 = arith.cmpi ne, %2, %c0_i32_0 : i32
    %c0_i32_1 = arith.constant 0 : i32
    %4 = arith.cmpi slt, %2, %c0_i32_1 : i32
    %c0_i32_2 = arith.constant 0 : i32
    %5 = arith.cmpi slt, %1, %c0_i32_2 : i32
    %6 = arith.xori %4, %5 : i1
    %7 = arith.andi %6, %3 : i1
    %8 = arith.addi %2, %1 : i32
    %9 = arith.select %7, %8, %2 : i32
    %c0_i32_3 = arith.constant 0 : i32
    %10 = arith.cmpi eq, %arg1, %c0_i32_3 : i32
    %11 = arith.extui %10 : i1 to i32
    %c0_i32_4 = arith.constant 0 : i32
    %12 = arith.cmpi ne, %11, %c0_i32_4 : i32
    scf.if %12 {
      %c16_i32 = arith.constant 16 : i32
      %56 = arith.muli %arg0, %c16_i32 : i32
      %c0_i32_25 = arith.constant 0 : i32
      %57 = arith.addi %56, %c0_i32_25 : i32
      %c0_i32_26 = arith.constant 0 : i32
      %58 = arith.addi %57, %c0_i32_26 : i32
      %59 = arith.index_cast %58 : i32 to index
      %60 = memref.load %arg2[%59] : memref<32xi32, #tpu.memory_space<smem>>
      %c0_i32_27 = arith.constant 0 : i32
      %c0_i32_28 = arith.constant 0 : i32
      %c0_i32_29 = arith.constant 0 : i32
      %61 = tpu.memref_slice %arg6[%60, %c0_i32_29] : memref<64x128xf32, #tpu.memory_space<any>> -> memref<1x128xf32, #tpu.memory_space<any>>
      %c0_i32_30 = arith.constant 0 : i32
      %62 = tpu.memref_slice %arg8[%c0_i32_27, %c0_i32_26, %c0_i32_30] : memref<2x8x128xf32, #tpu.memory_space<vmem>> -> memref<1x1x128xf32, #tpu.memory_space<vmem>>
      %63 = tpu.memref_squeeze %62 : memref<1x1x128xf32, #tpu.memory_space<vmem>> -> memref<1x128xf32, #tpu.memory_space<vmem>>
      %64 = tpu.memref_slice %arg9[%c0_i32_28] : memref<2x!tpu.dma_semaphore, #tpu.memory_space<semaphore_mem>> -> memref<1x!tpu.dma_semaphore, #tpu.memory_space<semaphore_mem>>
      %65 = tpu.memref_squeeze %64 : memref<1x!tpu.dma_semaphore, #tpu.memory_space<semaphore_mem>> -> memref<!tpu.dma_semaphore, #tpu.memory_space<semaphore_mem>>
      tpu.enqueue_dma source(%61 : memref<1x128xf32, #tpu.memory_space<any>>) target(%63 : memref<1x128xf32, #tpu.memory_space<vmem>>) target_semaphore(%65 : memref<!tpu.dma_semaphore, #tpu.memory_space<semaphore_mem>>)
      %c1_i32_31 = arith.constant 1 : i32
      %66 = arith.addi %57, %c1_i32_31 : i32
      %67 = arith.index_cast %66 : i32 to index
      %68 = memref.load %arg2[%67] : memref<32xi32, #tpu.memory_space<smem>>
      %c0_i32_32 = arith.constant 0 : i32
      %c0_i32_33 = arith.constant 0 : i32
      %c0_i32_34 = arith.constant 0 : i32
      %69 = tpu.memref_slice %arg6[%68, %c0_i32_34] : memref<64x128xf32, #tpu.memory_space<any>> -> memref<1x128xf32, #tpu.memory_space<any>>
      %c0_i32_35 = arith.constant 0 : i32
      %70 = tpu.memref_slice %arg8[%c0_i32_32, %c1_i32_31, %c0_i32_35] : memref<2x8x128xf32, #tpu.memory_space<vmem>> -> memref<1x1x128xf32, #tpu.memory_space<vmem>>
      %71 = tpu.memref_squeeze %70 : memref<1x1x128xf32, #tpu.memory_space<vmem>> -> memref<1x128xf32, #tpu.memory_space<vmem>>
      %72 = tpu.memref_slice %arg9[%c0_i32_33] : memref<2x!tpu.dma_semaphore, #tpu.memory_space<semaphore_mem>> -> memref<1x!tpu.dma_semaphore, #tpu.memory_space<semaphore_mem>>
      %73 = tpu.memref_squeeze %72 : memref<1x!tpu.dma_semaphore, #tpu.memory_space<semaphore_mem>> -> memref<!tpu.dma_semaphore, #tpu.memory_space<semaphore_mem>>
      tpu.enqueue_dma source(%69 : memref<1x128xf32, #tpu.memory_space<any>>) target(%71 : memref<1x128xf32, #tpu.memory_space<vmem>>) target_semaphore(%73 : memref<!tpu.dma_semaphore, #tpu.memory_space<semaphore_mem>>)
      %c2_i32_36 = arith.constant 2 : i32
      %74 = arith.addi %57, %c2_i32_36 : i32
      %75 = arith.index_cast %74 : i32 to index
      %76 = memref.load %arg2[%75] : memref<32xi32, #tpu.memory_space<smem>>
      %c0_i32_37 = arith.constant 0 : i32
      %c0_i32_38 = arith.constant 0 : i32
      %c0_i32_39 = arith.constant 0 : i32
      %77 = tpu.memref_slice %arg6[%76, %c0_i32_39] : memref<64x128xf32, #tpu.memory_space<any>> -> memref<1x128xf32, #tpu.memory_space<any>>
      %c0_i32_40 = arith.constant 0 : i32
      %78 = tpu.memref_slice %arg8[%c0_i32_37, %c2_i32_36, %c0_i32_40] : memref<2x8x128xf32, #tpu.memory_space<vmem>> -> memref<1x1x128xf32, #tpu.memory_space<vmem>>
      %79 = tpu.memref_squeeze %78 : memref<1x1x128xf32, #tpu.memory_space<vmem>> -> memref<1x128xf32, #tpu.memory_space<vmem>>
      %80 = tpu.memref_slice %arg9[%c0_i32_38] : memref<2x!tpu.dma_semaphore, #tpu.memory_space<semaphore_mem>> -> memref<1x!tpu.dma_semaphore, #tpu.memory_space<semaphore_mem>>
      %81 = tpu.memref_squeeze %80 : memref<1x!tpu.dma_semaphore, #tpu.memory_space<semaphore_mem>> -> memref<!tpu.dma_semaphore, #tpu.memory_space<semaphore_mem>>
      tpu.enqueue_dma source(%77 : memref<1x128xf32, #tpu.memory_space<any>>) target(%79 : memref<1x128xf32, #tpu.memory_space<vmem>>) target_semaphore(%81 : memref<!tpu.dma_semaphore, #tpu.memory_space<semaphore_mem>>)
      %c3_i32 = arith.constant 3 : i32
      %82 = arith.addi %57, %c3_i32 : i32
      %83 = arith.index_cast %82 : i32 to index
      %84 = memref.load %arg2[%83] : memref<32xi32, #tpu.memory_space<smem>>
      %c0_i32_41 = arith.constant 0 : i32
      %c0_i32_42 = arith.constant 0 : i32
      %c0_i32_43 = arith.constant 0 : i32
      %85 = tpu.memref_slice %arg6[%84, %c0_i32_43] : memref<64x128xf32, #tpu.memory_space<any>> -> memref<1x128xf32, #tpu.memory_space<any>>
      %c0_i32_44 = arith.constant 0 : i32
      %86 = tpu.memref_slice %arg8[%c0_i32_41, %c3_i32, %c0_i32_44] : memref<2x8x128xf32, #tpu.memory_space<vmem>> -> memref<1x1x128xf32, #tpu.memory_space<vmem>>
      %87 = tpu.memref_squeeze %86 : memref<1x1x128xf32, #tpu.memory_space<vmem>> -> memref<1x128xf32, #tpu.memory_space<vmem>>
      %88 = tpu.memref_slice %arg9[%c0_i32_42] : memref<2x!tpu.dma_semaphore, #tpu.memory_space<semaphore_mem>> -> memref<1x!tpu.dma_semaphore, #tpu.memory_space<semaphore_mem>>
      %89 = tpu.memref_squeeze %88 : memref<1x!tpu.dma_semaphore, #tpu.memory_space<semaphore_mem>> -> memref<!tpu.dma_semaphore, #tpu.memory_space<semaphore_mem>>
      tpu.enqueue_dma source(%85 : memref<1x128xf32, #tpu.memory_space<any>>) target(%87 : memref<1x128xf32, #tpu.memory_space<vmem>>) target_semaphore(%89 : memref<!tpu.dma_semaphore, #tpu.memory_space<semaphore_mem>>)
      %c4_i32 = arith.constant 4 : i32
      %90 = arith.addi %57, %c4_i32 : i32
      %91 = arith.index_cast %90 : i32 to index
      %92 = memref.load %arg2[%91] : memref<32xi32, #tpu.memory_space<smem>>
      %c0_i32_45 = arith.constant 0 : i32
      %c0_i32_46 = arith.constant 0 : i32
      %c0_i32_47 = arith.constant 0 : i32
      %93 = tpu.memref_slice %arg6[%92, %c0_i32_47] : memref<64x128xf32, #tpu.memory_space<any>> -> memref<1x128xf32, #tpu.memory_space<any>>
      %c0_i32_48 = arith.constant 0 : i32
      %94 = tpu.memref_slice %arg8[%c0_i32_45, %c4_i32, %c0_i32_48] : memref<2x8x128xf32, #tpu.memory_space<vmem>> -> memref<1x1x128xf32, #tpu.memory_space<vmem>>
      %95 = tpu.memref_squeeze %94 : memref<1x1x128xf32, #tpu.memory_space<vmem>> -> memref<1x128xf32, #tpu.memory_space<vmem>>
      %96 = tpu.memref_slice %arg9[%c0_i32_46] : memref<2x!tpu.dma_semaphore, #tpu.memory_space<semaphore_mem>> -> memref<1x!tpu.dma_semaphore, #tpu.memory_space<semaphore_mem>>
      %97 = tpu.memref_squeeze %96 : memref<1x!tpu.dma_semaphore, #tpu.memory_space<semaphore_mem>> -> memref<!tpu.dma_semaphore, #tpu.memory_space<semaphore_mem>>
      tpu.enqueue_dma source(%93 : memref<1x128xf32, #tpu.memory_space<any>>) target(%95 : memref<1x128xf32, #tpu.memory_space<vmem>>) target_semaphore(%97 : memref<!tpu.dma_semaphore, #tpu.memory_space<semaphore_mem>>)
      %c5_i32 = arith.constant 5 : i32
      %98 = arith.addi %57, %c5_i32 : i32
      %99 = arith.index_cast %98 : i32 to index
      %100 = memref.load %arg2[%99] : memref<32xi32, #tpu.memory_space<smem>>
      %c0_i32_49 = arith.constant 0 : i32
      %c0_i32_50 = arith.constant 0 : i32
      %c0_i32_51 = arith.constant 0 : i32
      %101 = tpu.memref_slice %arg6[%100, %c0_i32_51] : memref<64x128xf32, #tpu.memory_space<any>> -> memref<1x128xf32, #tpu.memory_space<any>>
      %c0_i32_52 = arith.constant 0 : i32
      %102 = tpu.memref_slice %arg8[%c0_i32_49, %c5_i32, %c0_i32_52] : memref<2x8x128xf32, #tpu.memory_space<vmem>> -> memref<1x1x128xf32, #tpu.memory_space<vmem>>
      %103 = tpu.memref_squeeze %102 : memref<1x1x128xf32, #tpu.memory_space<vmem>> -> memref<1x128xf32, #tpu.memory_space<vmem>>
      %104 = tpu.memref_slice %arg9[%c0_i32_50] : memref<2x!tpu.dma_semaphore, #tpu.memory_space<semaphore_mem>> -> memref<1x!tpu.dma_semaphore, #tpu.memory_space<semaphore_mem>>
      %105 = tpu.memref_squeeze %104 : memref<1x!tpu.dma_semaphore, #tpu.memory_space<semaphore_mem>> -> memref<!tpu.dma_semaphore, #tpu.memory_space<semaphore_mem>>
      tpu.enqueue_dma source(%101 : memref<1x128xf32, #tpu.memory_space<any>>) target(%103 : memref<1x128xf32, #tpu.memory_space<vmem>>) target_semaphore(%105 : memref<!tpu.dma_semaphore, #tpu.memory_space<semaphore_mem>>)
      %c6_i32 = arith.constant 6 : i32
      %106 = arith.addi %57, %c6_i32 : i32
      %107 = arith.index_cast %106 : i32 to index
      %108 = memref.load %arg2[%107] : memref<32xi32, #tpu.memory_space<smem>>
      %c0_i32_53 = arith.constant 0 : i32
      %c0_i32_54 = arith.constant 0 : i32
      %c0_i32_55 = arith.constant 0 : i32
      %109 = tpu.memref_slice %arg6[%108, %c0_i32_55] : memref<64x128xf32, #tpu.memory_space<any>> -> memref<1x128xf32, #tpu.memory_space<any>>
      %c0_i32_56 = arith.constant 0 : i32
      %110 = tpu.memref_slice %arg8[%c0_i32_53, %c6_i32, %c0_i32_56] : memref<2x8x128xf32, #tpu.memory_space<vmem>> -> memref<1x1x128xf32, #tpu.memory_space<vmem>>
      %111 = tpu.memref_squeeze %110 : memref<1x1x128xf32, #tpu.memory_space<vmem>> -> memref<1x128xf32, #tpu.memory_space<vmem>>
      %112 = tpu.memref_slice %arg9[%c0_i32_54] : memref<2x!tpu.dma_semaphore, #tpu.memory_space<semaphore_mem>> -> memref<1x!tpu.dma_semaphore, #tpu.memory_space<semaphore_mem>>
      %113 = tpu.memref_squeeze %112 : memref<1x!tpu.dma_semaphore, #tpu.memory_space<semaphore_mem>> -> memref<!tpu.dma_semaphore, #tpu.memory_space<semaphore_mem>>
      tpu.enqueue_dma source(%109 : memref<1x128xf32, #tpu.memory_space<any>>) target(%111 : memref<1x128xf32, #tpu.memory_space<vmem>>) target_semaphore(%113 : memref<!tpu.dma_semaphore, #tpu.memory_space<semaphore_mem>>)
      %c7_i32 = arith.constant 7 : i32
      %114 = arith.addi %57, %c7_i32 : i32
      %115 = arith.index_cast %114 : i32 to index
      %116 = memref.load %arg2[%115] : memref<32xi32, #tpu.memory_space<smem>>
      %c0_i32_57 = arith.constant 0 : i32
      %c0_i32_58 = arith.constant 0 : i32
      %c0_i32_59 = arith.constant 0 : i32
      %117 = tpu.memref_slice %arg6[%116, %c0_i32_59] : memref<64x128xf32, #tpu.memory_space<any>> -> memref<1x128xf32, #tpu.memory_space<any>>
      %c0_i32_60 = arith.constant 0 : i32
      %118 = tpu.memref_slice %arg8[%c0_i32_57, %c7_i32, %c0_i32_60] : memref<2x8x128xf32, #tpu.memory_space<vmem>> -> memref<1x1x128xf32, #tpu.memory_space<vmem>>
      %119 = tpu.memref_squeeze %118 : memref<1x1x128xf32, #tpu.memory_space<vmem>> -> memref<1x128xf32, #tpu.memory_space<vmem>>
      %120 = tpu.memref_slice %arg9[%c0_i32_58] : memref<2x!tpu.dma_semaphore, #tpu.memory_space<semaphore_mem>> -> memref<1x!tpu.dma_semaphore, #tpu.memory_space<semaphore_mem>>
      %121 = tpu.memref_squeeze %120 : memref<1x!tpu.dma_semaphore, #tpu.memory_space<semaphore_mem>> -> memref<!tpu.dma_semaphore, #tpu.memory_space<semaphore_mem>>
      tpu.enqueue_dma source(%117 : memref<1x128xf32, #tpu.memory_space<any>>) target(%119 : memref<1x128xf32, #tpu.memory_space<vmem>>) target_semaphore(%121 : memref<!tpu.dma_semaphore, #tpu.memory_space<semaphore_mem>>)
      %c8_i32_61 = arith.constant 8 : i32
    } else {
    }
    %c1_i32_5 = arith.constant 1 : i32
    %13 = arith.addi %arg1, %c1_i32_5 : i32
    %c2_i32_6 = arith.constant 2 : i32
    %14 = arith.cmpi slt, %13, %c2_i32_6 : i32
    %15 = arith.extui %14 : i1 to i32
    %c0_i32_7 = arith.constant 0 : i32
    %16 = arith.cmpi ne, %15, %c0_i32_7 : i32
    scf.if %16 {
      %c1_i32_25 = arith.constant 1 : i32
      %56 = arith.addi %arg1, %c1_i32_25 : i32
      %c1_i32_26 = arith.constant 1 : i32
      %57 = arith.subi %c1_i32_26, %9 : i32
      %c16_i32 = arith.constant 16 : i32
      %58 = arith.muli %arg0, %c16_i32 : i32
      %c8_i32_27 = arith.constant 8 : i32
      %59 = arith.muli %56, %c8_i32_27 : i32
      %60 = arith.addi %58, %59 : i32
      %c0_i32_28 = arith.constant 0 : i32
      %61 = arith.addi %60, %c0_i32_28 : i32
      %62 = arith.index_cast %61 : i32 to index
      %63 = memref.load %arg2[%62] : memref<32xi32, #tpu.memory_space<smem>>
      %c0_i32_29 = arith.constant 0 : i32
      %64 = tpu.memref_slice %arg6[%63, %c0_i32_29] : memref<64x128xf32, #tpu.memory_space<any>> -> memref<1x128xf32, #tpu.memory_space<any>>
      %c0_i32_30 = arith.constant 0 : i32
      %65 = tpu.memref_slice %arg8[%57, %c0_i32_28, %c0_i32_30] : memref<2x8x128xf32, #tpu.memory_space<vmem>> -> memref<1x1x128xf32, #tpu.memory_space<vmem>>
      %66 = tpu.memref_squeeze %65 : memref<1x1x128xf32, #tpu.memory_space<vmem>> -> memref<1x128xf32, #tpu.memory_space<vmem>>
      %67 = tpu.memref_slice %arg9[%57] : memref<2x!tpu.dma_semaphore, #tpu.memory_space<semaphore_mem>> -> memref<1x!tpu.dma_semaphore, #tpu.memory_space<semaphore_mem>>
      %68 = tpu.memref_squeeze %67 : memref<1x!tpu.dma_semaphore, #tpu.memory_space<semaphore_mem>> -> memref<!tpu.dma_semaphore, #tpu.memory_space<semaphore_mem>>
      tpu.enqueue_dma source(%64 : memref<1x128xf32, #tpu.memory_space<any>>) target(%66 : memref<1x128xf32, #tpu.memory_space<vmem>>) target_semaphore(%68 : memref<!tpu.dma_semaphore, #tpu.memory_space<semaphore_mem>>)
      %c1_i32_31 = arith.constant 1 : i32
      %69 = arith.addi %60, %c1_i32_31 : i32
      %70 = arith.index_cast %69 : i32 to index
      %71 = memref.load %arg2[%70] : memref<32xi32, #tpu.memory_space<smem>>
      %c0_i32_32 = arith.constant 0 : i32
      %72 = tpu.memref_slice %arg6[%71, %c0_i32_32] : memref<64x128xf32, #tpu.memory_space<any>> -> memref<1x128xf32, #tpu.memory_space<any>>
      %c0_i32_33 = arith.constant 0 : i32
      %73 = tpu.memref_slice %arg8[%57, %c1_i32_31, %c0_i32_33] : memref<2x8x128xf32, #tpu.memory_space<vmem>> -> memref<1x1x128xf32, #tpu.memory_space<vmem>>
      %74 = tpu.memref_squeeze %73 : memref<1x1x128xf32, #tpu.memory_space<vmem>> -> memref<1x128xf32, #tpu.memory_space<vmem>>
      %75 = tpu.memref_slice %arg9[%57] : memref<2x!tpu.dma_semaphore, #tpu.memory_space<semaphore_mem>> -> memref<1x!tpu.dma_semaphore, #tpu.memory_space<semaphore_mem>>
      %76 = tpu.memref_squeeze %75 : memref<1x!tpu.dma_semaphore, #tpu.memory_space<semaphore_mem>> -> memref<!tpu.dma_semaphore, #tpu.memory_space<semaphore_mem>>
      tpu.enqueue_dma source(%72 : memref<1x128xf32, #tpu.memory_space<any>>) target(%74 : memref<1x128xf32, #tpu.memory_space<vmem>>) target_semaphore(%76 : memref<!tpu.dma_semaphore, #tpu.memory_space<semaphore_mem>>)
      %c2_i32_34 = arith.constant 2 : i32
      %77 = arith.addi %60, %c2_i32_34 : i32
      %78 = arith.index_cast %77 : i32 to index
      %79 = memref.load %arg2[%78] : memref<32xi32, #tpu.memory_space<smem>>
      %c0_i32_35 = arith.constant 0 : i32
      %80 = tpu.memref_slice %arg6[%79, %c0_i32_35] : memref<64x128xf32, #tpu.memory_space<any>> -> memref<1x128xf32, #tpu.memory_space<any>>
      %c0_i32_36 = arith.constant 0 : i32
      %81 = tpu.memref_slice %arg8[%57, %c2_i32_34, %c0_i32_36] : memref<2x8x128xf32, #tpu.memory_space<vmem>> -> memref<1x1x128xf32, #tpu.memory_space<vmem>>
      %82 = tpu.memref_squeeze %81 : memref<1x1x128xf32, #tpu.memory_space<vmem>> -> memref<1x128xf32, #tpu.memory_space<vmem>>
      %83 = tpu.memref_slice %arg9[%57] : memref<2x!tpu.dma_semaphore, #tpu.memory_space<semaphore_mem>> -> memref<1x!tpu.dma_semaphore, #tpu.memory_space<semaphore_mem>>
      %84 = tpu.memref_squeeze %83 : memref<1x!tpu.dma_semaphore, #tpu.memory_space<semaphore_mem>> -> memref<!tpu.dma_semaphore, #tpu.memory_space<semaphore_mem>>
      tpu.enqueue_dma source(%80 : memref<1x128xf32, #tpu.memory_space<any>>) target(%82 : memref<1x128xf32, #tpu.memory_space<vmem>>) target_semaphore(%84 : memref<!tpu.dma_semaphore, #tpu.memory_space<semaphore_mem>>)
      %c3_i32 = arith.constant 3 : i32
      %85 = arith.addi %60, %c3_i32 : i32
      %86 = arith.index_cast %85 : i32 to index
      %87 = memref.load %arg2[%86] : memref<32xi32, #tpu.memory_space<smem>>
      %c0_i32_37 = arith.constant 0 : i32
      %88 = tpu.memref_slice %arg6[%87, %c0_i32_37] : memref<64x128xf32, #tpu.memory_space<any>> -> memref<1x128xf32, #tpu.memory_space<any>>
      %c0_i32_38 = arith.constant 0 : i32
      %89 = tpu.memref_slice %arg8[%57, %c3_i32, %c0_i32_38] : memref<2x8x128xf32, #tpu.memory_space<vmem>> -> memref<1x1x128xf32, #tpu.memory_space<vmem>>
      %90 = tpu.memref_squeeze %89 : memref<1x1x128xf32, #tpu.memory_space<vmem>> -> memref<1x128xf32, #tpu.memory_space<vmem>>
      %91 = tpu.memref_slice %arg9[%57] : memref<2x!tpu.dma_semaphore, #tpu.memory_space<semaphore_mem>> -> memref<1x!tpu.dma_semaphore, #tpu.memory_space<semaphore_mem>>
      %92 = tpu.memref_squeeze %91 : memref<1x!tpu.dma_semaphore, #tpu.memory_space<semaphore_mem>> -> memref<!tpu.dma_semaphore, #tpu.memory_space<semaphore_mem>>
      tpu.enqueue_dma source(%88 : memref<1x128xf32, #tpu.memory_space<any>>) target(%90 : memref<1x128xf32, #tpu.memory_space<vmem>>) target_semaphore(%92 : memref<!tpu.dma_semaphore, #tpu.memory_space<semaphore_mem>>)
      %c4_i32 = arith.constant 4 : i32
      %93 = arith.addi %60, %c4_i32 : i32
      %94 = arith.index_cast %93 : i32 to index
      %95 = memref.load %arg2[%94] : memref<32xi32, #tpu.memory_space<smem>>
      %c0_i32_39 = arith.constant 0 : i32
      %96 = tpu.memref_slice %arg6[%95, %c0_i32_39] : memref<64x128xf32, #tpu.memory_space<any>> -> memref<1x128xf32, #tpu.memory_space<any>>
      %c0_i32_40 = arith.constant 0 : i32
      %97 = tpu.memref_slice %arg8[%57, %c4_i32, %c0_i32_40] : memref<2x8x128xf32, #tpu.memory_space<vmem>> -> memref<1x1x128xf32, #tpu.memory_space<vmem>>
      %98 = tpu.memref_squeeze %97 : memref<1x1x128xf32, #tpu.memory_space<vmem>> -> memref<1x128xf32, #tpu.memory_space<vmem>>
      %99 = tpu.memref_slice %arg9[%57] : memref<2x!tpu.dma_semaphore, #tpu.memory_space<semaphore_mem>> -> memref<1x!tpu.dma_semaphore, #tpu.memory_space<semaphore_mem>>
      %100 = tpu.memref_squeeze %99 : memref<1x!tpu.dma_semaphore, #tpu.memory_space<semaphore_mem>> -> memref<!tpu.dma_semaphore, #tpu.memory_space<semaphore_mem>>
      tpu.enqueue_dma source(%96 : memref<1x128xf32, #tpu.memory_space<any>>) target(%98 : memref<1x128xf32, #tpu.memory_space<vmem>>) target_semaphore(%100 : memref<!tpu.dma_semaphore, #tpu.memory_space<semaphore_mem>>)
      %c5_i32 = arith.constant 5 : i32
      %101 = arith.addi %60, %c5_i32 : i32
      %102 = arith.index_cast %101 : i32 to index
      %103 = memref.load %arg2[%102] : memref<32xi32, #tpu.memory_space<smem>>
      %c0_i32_41 = arith.constant 0 : i32
      %104 = tpu.memref_slice %arg6[%103, %c0_i32_41] : memref<64x128xf32, #tpu.memory_space<any>> -> memref<1x128xf32, #tpu.memory_space<any>>
      %c0_i32_42 = arith.constant 0 : i32
      %105 = tpu.memref_slice %arg8[%57, %c5_i32, %c0_i32_42] : memref<2x8x128xf32, #tpu.memory_space<vmem>> -> memref<1x1x128xf32, #tpu.memory_space<vmem>>
      %106 = tpu.memref_squeeze %105 : memref<1x1x128xf32, #tpu.memory_space<vmem>> -> memref<1x128xf32, #tpu.memory_space<vmem>>
      %107 = tpu.memref_slice %arg9[%57] : memref<2x!tpu.dma_semaphore, #tpu.memory_space<semaphore_mem>> -> memref<1x!tpu.dma_semaphore, #tpu.memory_space<semaphore_mem>>
      %108 = tpu.memref_squeeze %107 : memref<1x!tpu.dma_semaphore, #tpu.memory_space<semaphore_mem>> -> memref<!tpu.dma_semaphore, #tpu.memory_space<semaphore_mem>>
      tpu.enqueue_dma source(%104 : memref<1x128xf32, #tpu.memory_space<any>>) target(%106 : memref<1x128xf32, #tpu.memory_space<vmem>>) target_semaphore(%108 : memref<!tpu.dma_semaphore, #tpu.memory_space<semaphore_mem>>)
      %c6_i32 = arith.constant 6 : i32
      %109 = arith.addi %60, %c6_i32 : i32
      %110 = arith.index_cast %109 : i32 to index
      %111 = memref.load %arg2[%110] : memref<32xi32, #tpu.memory_space<smem>>
      %c0_i32_43 = arith.constant 0 : i32
      %112 = tpu.memref_slice %arg6[%111, %c0_i32_43] : memref<64x128xf32, #tpu.memory_space<any>> -> memref<1x128xf32, #tpu.memory_space<any>>
      %c0_i32_44 = arith.constant 0 : i32
      %113 = tpu.memref_slice %arg8[%57, %c6_i32, %c0_i32_44] : memref<2x8x128xf32, #tpu.memory_space<vmem>> -> memref<1x1x128xf32, #tpu.memory_space<vmem>>
      %114 = tpu.memref_squeeze %113 : memref<1x1x128xf32, #tpu.memory_space<vmem>> -> memref<1x128xf32, #tpu.memory_space<vmem>>
      %115 = tpu.memref_slice %arg9[%57] : memref<2x!tpu.dma_semaphore, #tpu.memory_space<semaphore_mem>> -> memref<1x!tpu.dma_semaphore, #tpu.memory_space<semaphore_mem>>
      %116 = tpu.memref_squeeze %115 : memref<1x!tpu.dma_semaphore, #tpu.memory_space<semaphore_mem>> -> memref<!tpu.dma_semaphore, #tpu.memory_space<semaphore_mem>>
      tpu.enqueue_dma source(%112 : memref<1x128xf32, #tpu.memory_space<any>>) target(%114 : memref<1x128xf32, #tpu.memory_space<vmem>>) target_semaphore(%116 : memref<!tpu.dma_semaphore, #tpu.memory_space<semaphore_mem>>)
      %c7_i32 = arith.constant 7 : i32
      %117 = arith.addi %60, %c7_i32 : i32
      %118 = arith.index_cast %117 : i32 to index
      %119 = memref.load %arg2[%118] : memref<32xi32, #tpu.memory_space<smem>>
      %c0_i32_45 = arith.constant 0 : i32
      %120 = tpu.memref_slice %arg6[%119, %c0_i32_45] : memref<64x128xf32, #tpu.memory_space<any>> -> memref<1x128xf32, #tpu.memory_space<any>>
      %c0_i32_46 = arith.constant 0 : i32
      %121 = tpu.memref_slice %arg8[%57, %c7_i32, %c0_i32_46] : memref<2x8x128xf32, #tpu.memory_space<vmem>> -> memref<1x1x128xf32, #tpu.memory_space<vmem>>
      %122 = tpu.memref_squeeze %121 : memref<1x1x128xf32, #tpu.memory_space<vmem>> -> memref<1x128xf32, #tpu.memory_space<vmem>>
      %123 = tpu.memref_slice %arg9[%57] : memref<2x!tpu.dma_semaphore, #tpu.memory_space<semaphore_mem>> -> memref<1x!tpu.dma_semaphore, #tpu.memory_space<semaphore_mem>>
      %124 = tpu.memref_squeeze %123 : memref<1x!tpu.dma_semaphore, #tpu.memory_space<semaphore_mem>> -> memref<!tpu.dma_semaphore, #tpu.memory_space<semaphore_mem>>
      tpu.enqueue_dma source(%120 : memref<1x128xf32, #tpu.memory_space<any>>) target(%122 : memref<1x128xf32, #tpu.memory_space<vmem>>) target_semaphore(%124 : memref<!tpu.dma_semaphore, #tpu.memory_space<semaphore_mem>>)
      %c8_i32_47 = arith.constant 8 : i32
    } else {
    }
    %c0_i32_8 = arith.constant 0 : i32
    %c0_i32_9 = arith.constant 0 : i32
    %17 = tpu.memref_slice %arg8[%9, %c0_i32_8, %c0_i32_9] : memref<2x8x128xf32, #tpu.memory_space<vmem>> -> memref<1x8x128xf32, #tpu.memory_space<vmem>>
    %18 = tpu.memref_squeeze %17 : memref<1x8x128xf32, #tpu.memory_space<vmem>> -> memref<8x128xf32, #tpu.memory_space<vmem>>
    %c0_i32_10 = arith.constant 0 : i32
    %c0_i32_11 = arith.constant 0 : i32
    %19 = tpu.memref_slice %arg8[%9, %c0_i32_10, %c0_i32_11] : memref<2x8x128xf32, #tpu.memory_space<vmem>> -> memref<1x8x128xf32, #tpu.memory_space<vmem>>
    %20 = tpu.memref_squeeze %19 : memref<1x8x128xf32, #tpu.memory_space<vmem>> -> memref<8x128xf32, #tpu.memory_space<vmem>>
    %21 = tpu.memref_slice %arg9[%9] : memref<2x!tpu.dma_semaphore, #tpu.memory_space<semaphore_mem>> -> memref<1x!tpu.dma_semaphore, #tpu.memory_space<semaphore_mem>>
    %22 = tpu.memref_squeeze %21 : memref<1x!tpu.dma_semaphore, #tpu.memory_space<semaphore_mem>> -> memref<!tpu.dma_semaphore, #tpu.memory_space<semaphore_mem>>
    tpu.wait_dma2 semaphore(%22 : memref<!tpu.dma_semaphore, #tpu.memory_space<semaphore_mem>>) src(%18 : memref<8x128xf32, #tpu.memory_space<vmem>>) dst(%20 : memref<8x128xf32, #tpu.memory_space<vmem>>)
    %c8_i32 = arith.constant 8 : i32
    %23 = arith.muli %arg1, %c8_i32 : i32
    %24 = tpu.assume_multiple %23, 8 : i32
    %25 = arith.index_cast %24 : i32 to index
    %c0 = arith.constant 0 : index
    %26 = vector.load %arg3[%25, %c0] : memref<16x128xf32, #tpu.memory_space<vmem>>, vector<8x128xf32>
    %27 = arith.index_cast %9 : i32 to index
    %c0_12 = arith.constant 0 : index
    %c0_13 = arith.constant 0 : index
    %28 = vector.load %arg8[%27, %c0_12, %c0_13] : memref<2x8x128xf32, #tpu.memory_space<vmem>>, vector<1x8x128xf32>
    %29 = vector.shape_cast %28 : vector<1x8x128xf32> to vector<8x128xf32>
    %c0_14 = arith.constant 0 : index
    %c0_15 = arith.constant 0 : index
    %30 = vector.load %arg4[%c0_14, %c0_15] : memref<1x128xf32, #tpu.memory_space<vmem>>, vector<1x128xf32>
    %c0_16 = arith.constant 0 : index
    %c0_17 = arith.constant 0 : index
    %31 = vector.load %arg5[%c0_16, %c0_17] : memref<1x128xf32, #tpu.memory_space<vmem>>, vector<1x128xf32>
    %32 = arith.addf %29, %26 : vector<8x128xf32>
    %cst = arith.constant dense<0.000000e+00> : vector<8xf32>
    %33 = vector.multi_reduction <add>, %32, %cst [1] : vector<8x128xf32> to vector<8xf32>
    %34 = vector.shape_cast %33 : vector<8xf32> to vector<8x1xf32>
    %cst_18 = arith.constant 1.280000e+02 : f32
    %35 = vector.broadcast %cst_18 : f32 to vector<8x1xf32>
    %36 = arith.divf %34, %35 : vector<8x1xf32>
    %37 = vector.broadcast %36 : vector<8x1xf32> to vector<8x128xf32>
    %38 = arith.subf %32, %37 : vector<8x128xf32>
    %39 = arith.mulf %38, %38 : vector<8x128xf32>
    %cst_19 = arith.constant dense<0.000000e+00> : vector<8xf32>
    %40 = vector.multi_reduction <add>, %39, %cst_19 [1] : vector<8x128xf32> to vector<8xf32>
    %41 = vector.shape_cast %40 : vector<8xf32> to vector<8x1xf32>
    %cst_20 = arith.constant 1.280000e+02 : f32
    %42 = vector.broadcast %cst_20 : f32 to vector<8x1xf32>
    %43 = arith.divf %41, %42 : vector<8x1xf32>
    %cst_21 = arith.constant 9.99999996E-13 : f32
    %44 = vector.broadcast %cst_21 : f32 to vector<8x1xf32>
    %45 = arith.addf %43, %44 : vector<8x1xf32>
    %46 = math.rsqrt %45 : vector<8x1xf32>
    %47 = vector.broadcast %46 : vector<8x1xf32> to vector<8x128xf32>
    %48 = arith.mulf %38, %47 : vector<8x128xf32>
    %49 = vector.broadcast %30 : vector<1x128xf32> to vector<8x128xf32>
    %50 = arith.mulf %48, %49 : vector<8x128xf32>
    %51 = vector.broadcast %31 : vector<1x128xf32> to vector<8x128xf32>
    %52 = arith.addf %50, %51 : vector<8x128xf32>
    %c0_22 = arith.constant 0 : index
    %c0_23 = arith.constant 0 : index
    %c0_24 = arith.constant 0 : index
    %53 = vector.load %arg7[%c0_22, %c0_23, %c0_24] : memref<1x8x128xf32, #tpu.memory_space<vmem>>, vector<1x8x128xf32>
    %54 = vector.shape_cast %53 : vector<1x8x128xf32> to vector<8x128xf32>
    %55 = vector.shape_cast %52 : vector<8x128xf32> to vector<1x8x128xf32>
    tpu.vector_store %arg7[%c0_22, %c0_23, %c0_24], %55 {strides = array<i32>} : memref<1x8x128xf32, #tpu.memory_space<vmem>>, vector<1x8x128xf32>,
    return
  }
  func.func @transform_0(%arg0: i32, %arg1: i32, %arg2: memref<32xi32, #tpu.memory_space<smem>>) -> (i32, i32) {
    %c0_i32 = arith.constant 0 : i32
    %c0_i32_0 = arith.constant 0 : i32
    %c0_i32_1 = arith.constant 0 : i32
    return %c0_i32, %c0_i32_0 : i32, i32
  }
  func.func @transform_1(%arg0: i32, %arg1: i32, %arg2: memref<32xi32, #tpu.memory_space<smem>>) -> (i32, i32) {
    %c0_i32 = arith.constant 0 : i32
    %c0_i32_0 = arith.constant 0 : i32
    %c0_i32_1 = arith.constant 0 : i32
    return %c0_i32, %c0_i32_0 : i32, i32
  }
  func.func @transform_2(%arg0: i32, %arg1: i32, %arg2: memref<32xi32, #tpu.memory_space<smem>>) -> (i32, i32) {
    %c0_i32 = arith.constant 0 : i32
    %c0_i32_0 = arith.constant 0 : i32
    %c0_i32_1 = arith.constant 0 : i32
    return %c0_i32, %c0_i32_0 : i32, i32
  }
  func.func @transform_4(%arg0: i32, %arg1: i32, %arg2: memref<32xi32, #tpu.memory_space<smem>>) -> (i32, i32, i32) {
    %c0_i32 = arith.constant 0 : i32
    %c0_i32_0 = arith.constant 0 : i32
    return %arg0, %arg1, %c0_i32 : i32, i32, i32
  }
}

</mosaic_0001>

<llo_original>
// kernel: distilbert_embeddings.1
$region0: #{distilbert_embeddings.1}
  #allocation0 [shape = 'u32[]', space=smem, size = 0x4, offset = 0x4, fixed_abs, tag = 'smem constant byte address 0x4 - core index']
  #allocation1 [shape = 'u32[144,128]{1,0:T(1,128)}', space=vmem, size = 0x12000, scoped, tag = 'internal scratch']
  #allocation2 [shape = 'f32[2,8,128]{2,1,0:T(8,128)}', space=vmem, size = 0x2000, scoped, tag = 'scratch operand']
  #allocation3 [shape = 's32[2]{0}', space=sflag, size = 0x8, scoped, tag = 'scratch operand']
  #allocation4 [shape = 's32[1]{0}', space=sflag, size = 0x4, scoped, tag = 'scoped memory for distilbert_embeddings.1']
  #allocation5 [shape = 'u8[512]{0}', space=smem, size = 0x200, scoped, tag = 'prefetched SMEM operand 0']
  #allocation8 [shape = 's32[]', space=sflag, size = 0x4, offset = 0, fixed_abs, tag = 'sflag constant byte address 0x0 - dummy sync flag']
  #allocation9 [shape = 's32[]', space=sflag, size = 0x4, offset = 0, fixed_abs, tag = 'sflag constant byte address 0x0 - dummy sync flag']
  #allocation10 [shape = 'u32[]', space=smem, size = 0x4, offset = 0x44, fixed_abs, tag = 'smem constant byte address 0x44 - assertion arg 0']
  #allocation11 [shape = 'u32[]', space=smem, size = 0x4, offset = 0x48, fixed_abs, tag = 'smem constant byte address 0x48 - assertion arg 1']
  #allocation12 [shape = 's32[]', space=sflag, size = 0x4, offset = 0, fixed_abs, tag = 'sflag constant byte address 0x0 - dummy sync flag']
  #allocation13 [shape = 's32[]', space=sflag, size = 0x4, offset = 0, fixed_abs, tag = 'sflag constant byte address 0x0 - dummy sync flag']
  #allocation14 [shape = 's32[]', space=sflag, size = 0x4, offset = 0, fixed_abs, tag = 'sflag constant byte address 0x0 - dummy sync flag']
  #allocation15 [shape = 's32[]', space=sflag, size = 0x4, offset = 0, fixed_abs, tag = 'sflag constant byte address 0x0 - dummy sync flag']
  #allocation16 [shape = 's32[]', space=sflag, size = 0x4, offset = 0, fixed_abs, tag = 'sflag constant byte address 0x0 - dummy sync flag']
  #allocation17 [shape = 's32[]', space=sflag, size = 0x4, offset = 0, fixed_abs, tag = 'sflag constant byte address 0x0 - dummy sync flag']
  #allocation18 [shape = 's32[]', space=sflag, size = 0x4, offset = 0, fixed_abs, tag = 'sflag constant byte address 0x0 - dummy sync flag']
  #allocation19 [shape = 's32[]', space=sflag, size = 0x4, offset = 0, fixed_abs, tag = 'sflag constant byte address 0x0 - dummy sync flag']
  #allocation20 [shape = 's32[]', space=sflag, size = 0x4, offset = 0, fixed_abs, tag = 'sflag constant byte address 0x0 - dummy sync flag']
  #allocation21 [shape = 's32[]', space=sflag, size = 0x4, offset = 0, fixed_abs, tag = 'sflag constant byte address 0x0 - dummy sync flag']
  #allocation22 [shape = 's32[]', space=sflag, size = 0x4, offset = 0, fixed_abs, tag = 'sflag constant byte address 0x0 - dummy sync flag']
  #allocation23 [shape = 's32[]', space=sflag, size = 0x4, offset = 0, fixed_abs, tag = 'sflag constant byte address 0x0 - dummy sync flag']
  #allocation24 [shape = 's32[]', space=sflag, size = 0x4, offset = 0, fixed_abs, tag = 'sflag constant byte address 0x0 - dummy sync flag']
  #allocation25 [shape = 's32[]', space=sflag, size = 0x4, offset = 0, fixed_abs, tag = 'sflag constant byte address 0x0 - dummy sync flag']
  #allocation26 [shape = 's32[]', space=sflag, size = 0x4, offset = 0, fixed_abs, tag = 'sflag constant byte address 0x0 - dummy sync flag']
  #allocation27 [shape = 's32[]', space=sflag, size = 0x4, offset = 0, fixed_abs, tag = 'sflag constant byte address 0x0 - dummy sync flag']
  #allocation28 [shape = 's32[]', space=sflag, size = 0x4, offset = 0, fixed_abs, tag = 'sflag constant byte address 0x0 - dummy sync flag']
  #allocation29 [shape = 's32[]', space=sflag, size = 0x4, offset = 0, fixed_abs, tag = 'sflag constant byte address 0x0 - dummy sync flag']
  #allocation30 [shape = 's32[]', space=sflag, size = 0x4, offset = 0, fixed_abs, tag = 'sflag constant byte address 0x0 - dummy sync flag']
  #allocation31 [shape = 's32[]', space=sflag, size = 0x4, offset = 0, fixed_abs, tag = 'sflag constant byte address 0x0 - dummy sync flag']
  #allocation32 [shape = 's32[]', space=sflag, size = 0x4, offset = 0, fixed_abs, tag = 'sflag constant byte address 0x0 - dummy sync flag']
  #allocation33 [shape = 's32[]', space=sflag, size = 0x4, offset = 0, fixed_abs, tag = 'sflag constant byte address 0x0 - dummy sync flag']
  #allocation34 [shape = 's32[]', space=sflag, size = 0x4, offset = 0, fixed_abs, tag = 'sflag constant byte address 0x0 - dummy sync flag']
  #allocation35 [shape = 's32[]', space=sflag, size = 0x4, offset = 0, fixed_abs, tag = 'sflag constant byte address 0x0 - dummy sync flag']
  #allocation36 [shape = 's32[]', space=sflag, size = 0x4, offset = 0, fixed_abs, tag = 'sflag constant byte address 0x0 - dummy sync flag']
  #allocation37 [shape = 's32[]', space=sflag, size = 0x4, offset = 0, fixed_abs, tag = 'sflag constant byte address 0x0 - dummy sync flag']
  #allocation38 [shape = 's32[]', space=sflag, size = 0x4, offset = 0, fixed_abs, tag = 'sflag constant byte address 0x0 - dummy sync flag']
  #allocation39 [shape = 's32[]', space=sflag, size = 0x4, offset = 0, fixed_abs, tag = 'sflag constant byte address 0x0 - dummy sync flag']
  #allocation40 [shape = 's32[]', space=sflag, size = 0x4, offset = 0, fixed_abs, tag = 'sflag constant byte address 0x0 - dummy sync flag']
  #allocation41 [shape = 's32[]', space=sflag, size = 0x4, offset = 0, fixed_abs, tag = 'sflag constant byte address 0x0 - dummy sync flag']
  %s0 = inlined_call_operand.vmem [shape: s32[32], index: 0, kind: input, shape index: {}]
  %s1 = inlined_call_operand.vmem [shape: f32[16,128], index: 1, kind: input, shape index: {}]
  %s2 = inlined_call_operand.vmem [shape: f32[1,128], index: 2, kind: input, shape index: {}]
  %s3 = inlined_call_operand.vmem [shape: f32[1,128], index: 3, kind: input, shape index: {}]
  %s4 = inlined_call_operand.hbm [shape: f32[64,128], index: 4, kind: input, shape index: {}]
  %s5 = inlined_call_operand.hbm [shape: f32[2,16,128], index: 5, kind: output, shape index: {}]
  %s6 = sld [smem:[#allocation0]]
  $region117: #{distilbert_embeddings.1} parent=0
    _
  %s8 = ssub.s32 1, %s6
  %s9 = scalar_select 0, %s8, %s6
  %s10 = sshll.u32 %s0, 4
  %s11 = int_to_ptr.vmem [resolvable:$true] %s10
  %13 = dma.vmem_to_smem %s11, 16, [#allocation5], [#allocation4]
  %14 = dma.done [#allocation4], 16
  %15 = sfence
  $region1: #{distilbert_embeddings.1} parent=0
    #allocation6 [shape = 'u8[8192]{0}', space=vmem, size = 0x2000, scoped, tag = 'output window, operand 0']
    #allocation7 [shape = 's32[2]{0}', space=sflag, size = 0x8, scoped, tag = 'scoped memory for distilbert_embeddings.1']
    %16 = vsyncpa [#allocation7], 0
    %s17 = scalar_lea.sflag [#allocation7], 1
    %18 = vsyncpa %s17, 0
    loop: start=0, step=1, limit=6
    $region2: #{distilbert_embeddings.1} parent=1 // loop_pre_header
      _
    $region3: #{distilbert_embeddings.1} parent=1 // loop_header
      %s20 = sphi 0, %s24
      %p21 = scmp.ge.s32.totalorder %s20, 6
      %s27 = sphi 0, %s39
      %s28 = sphi 0, %s35
      %s29 = sphi 0, %s27
      %s30 = sphi 0, %s28
      %s31 = sphi 0, %s29
      %s32 = sphi 0, %s30
      %s40 = sphi 0, %s40
      %s42 = sphi 0, %s40
      %s43 = sphi 0, %s42
      %s57 = sphi 0, %s43
      %s61 = sphi 0, %s61
      %s63 = sphi 0, %s61
      %s64 = sphi 0, %s63
      %s78 = sphi 0, %s64
      %s82 = sphi 0, %s82
      %s84 = sphi 0, %s82
      %s85 = sphi 0, %s84
      %s99 = sphi 0, %s85
      %s107 = sphi 0, %s109
      %s110 = sphi 0, %s107
      %s111 = sphi 0, %s110
      %s127 = sphi 0, %s111
    $region4: #{distilbert_embeddings.1} parent=1 // loop_header_branch
      %23 = sbr.rel (%p21) target = $region8
    $region5: #{distilbert_embeddings.1} parent=1 // loop_body
      %s25 = ssub.s32 %s20, 1
      %s26 = ssub.s32 %s20, 2
      %s33 = sadd.s32 1, %s28
      %p34 = scmp.ge.s32.totalorder %s33, 2
      %s35 = scalar_select %p34, 0, %s33
      %s36 = sadd.s32 1, %s27
      %s37 = scalar_select %p34, %s36, %s27
      %p38 = scmp.ge.s32.totalorder %s37, 2
      %s39 = scalar_select %p38, 0, %s37
      %s41 = sadd.s32 %s40, 1
      %p44 = scmp.eq.s32.totalorder %s20, 3
      %p45 = scmp.ne.s32.totalorder %s40, %s42
      %p46 = scmp.eq.s32.totalorder %s20, 0
      %p47 = por %p45, %p46
      %p48 = scmp.ne.s32.totalorder %s40, %s42
      %p49 = scmp.eq.s32.totalorder %s25, 3
      %p50 = por %p48, %p49
      %p51 = scmp.ne.s32.totalorder %s42, %s43
      %p52 = scmp.eq.s32.totalorder %s25, 0
      %p53 = por %p51, %p52
      %p54 = scmp.ne.s32.totalorder %s42, %s43
      %p55 = scmp.eq.s32.totalorder %s26, 3
      %p56 = por %p54, %p55
      %p58 = scmp.ne.s32.totalorder %s43, %s57
      %p59 = scmp.eq.s32.totalorder %s26, 0
      %p60 = por %p58, %p59
      %s62 = sadd.s32 %s61, 1
      %p65 = scmp.eq.s32.totalorder %s20, 3
      %p66 = scmp.ne.s32.totalorder %s61, %s63
      %p67 = scmp.eq.s32.totalorder %s20, 0
      %p68 = por %p66, %p67
      %p69 = scmp.ne.s32.totalorder %s61, %s63
      %p70 = scmp.eq.s32.totalorder %s25, 3
      %p71 = por %p69, %p70
      %p72 = scmp.ne.s32.totalorder %s63, %s64
      %p73 = scmp.eq.s32.totalorder %s25, 0
      %p74 = por %p72, %p73
      %p75 = scmp.ne.s32.totalorder %s63, %s64
      %p76 = scmp.eq.s32.totalorder %s26, 3
      %p77 = por %p75, %p76
      %p79 = scmp.ne.s32.totalorder %s64, %s78
      %p80 = scmp.eq.s32.totalorder %s26, 0
      %p81 = por %p79, %p80
      %s83 = sadd.s32 %s82, 1
      %p86 = scmp.eq.s32.totalorder %s20, 3
      %p87 = scmp.ne.s32.totalorder %s82, %s84
      %p88 = scmp.eq.s32.totalorder %s20, 0
      %p89 = por %p87, %p88
      %p90 = scmp.ne.s32.totalorder %s82, %s84
      %p91 = scmp.eq.s32.totalorder %s25, 3
      %p92 = por %p90, %p91
      %p93 = scmp.ne.s32.totalorder %s84, %s85
      %p94 = scmp.eq.s32.totalorder %s25, 0
      %p95 = por %p93, %p94
      %p96 = scmp.ne.s32.totalorder %s84, %s85
      %p97 = scmp.eq.s32.totalorder %s26, 3
      %p98 = por %p96, %p97
      %p100 = scmp.ne.s32.totalorder %s85, %s99
      %p101 = scmp.eq.s32.totalorder %s26, 0
      %p102 = por %p100, %p101
      %s103 = ssub.s32 %s27, %s39
      %s104 = ssub.s32 %s28, %s35
      %s105 = sor.u32 %s103, %s104
      %p106 = scmp.eq.s32.totalorder %s105, 0
      %s108 = sadd.s32 %s107, 1
      %s109 = scalar_select %p106, %s107, %s108
      %p112 = pneg %p106
      %p113 = scmp.eq.s32.totalorder %s20, 3
      %p114 = por %p112, %p113
      %p115 = scmp.ne.s32.totalorder %s107, %s110
      %p116 = scmp.eq.s32.totalorder %s20, 0
      %p117 = por %p115, %p116
      %p118 = scmp.ne.s32.totalorder %s107, %s110
      %p119 = scmp.eq.s32.totalorder %s25, 3
      %p120 = por %p118, %p119
      %p121 = scmp.ne.s32.totalorder %s110, %s111
      %p122 = scmp.eq.s32.totalorder %s25, 0
      %p123 = por %p121, %p122
      %p124 = scmp.ne.s32.totalorder %s110, %s111
      %p125 = scmp.eq.s32.totalorder %s26, 3
      %p126 = por %p124, %p125
      %p128 = scmp.ne.s32.totalorder %s111, %s127
      %p129 = scmp.eq.s32.totalorder %s26, 0
      %p130 = por %p128, %p129
      %p131 = scmp.le.s32.totalorder 1, %s20
      %p132 = scmp.lt.s32.totalorder %s20, 5
      %p133 = pnand %p131, %p132
      %p134 = pneg %p133
      // Predicated region
      $region9: #{distilbert_embeddings.1} parent=5 // pred_check
        _
      $region10: #{distilbert_embeddings.1} parent=5 // pred_check_branch
        %136 = sbr.rel (%p133) target = $region12
      $region11: #{distilbert_embeddings.1} parent=5 // pred_region
        %s137 = ssub.s32 %s20, 1
        // Predicated region
        $region13: #{distilbert_embeddings.1} parent=11 // pred_check
          %p138 = pneg %p53
        $region14: #{distilbert_embeddings.1} parent=11 // pred_check_branch
          %140 = sbr.rel (%p138) target = $region16
        $region15: #{distilbert_embeddings.1} parent=11 // pred_region
          _
        $region16: #{distilbert_embeddings.1} parent=11 // pred_fallthru
          _
        // Predicated region
        $region17: #{distilbert_embeddings.1} parent=11 // pred_check
          %p141 = pneg %p74
        $region18: #{distilbert_embeddings.1} parent=11 // pred_check_branch
          %143 = sbr.rel (%p141) target = $region20
        $region19: #{distilbert_embeddings.1} parent=11 // pred_region
          _
        $region20: #{distilbert_embeddings.1} parent=11 // pred_fallthru
          _
        // Predicated region
        $region21: #{distilbert_embeddings.1} parent=11 // pred_check
          %p144 = pneg %p95
        $region22: #{distilbert_embeddings.1} parent=11 // pred_check_branch
          %146 = sbr.rel (%p144) target = $region24
        $region23: #{distilbert_embeddings.1} parent=11 // pred_region
          _
        $region24: #{distilbert_embeddings.1} parent=11 // pred_fallthru
          _
      $region12: #{distilbert_embeddings.1} parent=5 // pred_fallthru
        _
      %p147 = scmp.lt.s32.totalorder %s20, 4
      // Predicated region
      $region25: #{distilbert_embeddings.1} parent=5 // pred_check
        %p148 = pneg %p147
      $region26: #{distilbert_embeddings.1} parent=5 // pred_check_branch
        %150 = sbr.rel (%p148) target = $region28
      $region27: #{distilbert_embeddings.1} parent=5 // pred_region
        _
      $region28: #{distilbert_embeddings.1} parent=5 // pred_fallthru
        _
      %p151 = scmp.le.s32.totalorder 1, %s20
      %p152 = scmp.lt.s32.totalorder %s20, 5
      %p153 = pnand %p151, %p152
      %p154 = pneg %p153
      // Predicated region
      $region29: #{distilbert_embeddings.1} parent=5 // pred_check
        _
      $region30: #{distilbert_embeddings.1} parent=5 // pred_check_branch
        %156 = sbr.rel (%p153) target = $region32
      $region31: #{distilbert_embeddings.1} parent=5 // pred_region
        %s157 = ssub.s32 %s20, 1
        %p158 = pneg %p53
        %p159 = pneg %p50
        %p160 = pneg %p74
        %p161 = pneg %p71
        %p162 = pneg %p95
        %p163 = pneg %p92
        %p164 = pneg %p123
        %p165 = pneg %p120
        %s166 = sand.u32 %s110, 1
        %s167 = scalar_lea.sflag [#allocation7], %s166
        %s168 = sand.u32 %s110, 1
        %s169 = smul.addr %s168, 8
        %s170 = scalar_lea.vmem [#allocation6], %s169
        %p171 = scmp.lt.s32.totalorder %s30, 0
        %s172 = ssub.s32 0, %s30
        %s173 = scalar_select %p171, %s172, %s30
        %s174 = sand.u32 %s173, 1
        %s175 = ssub.s32 0, %s174
        %s176 = scalar_select %p171, %s175, %s174
        %p177 = scmp.ne.s32.totalorder %s176, 0
        %p178 = scmp.lt.s32.totalorder %s176, 0
        %p179 = pnand %p178, %p177
        %p180 = pneg %p179
        %s181 = sadd.s32 %s176, 2
        %s182 = scalar_select %p180, %s181, %s176
        %p183 = scmp.eq.s32.totalorder %s30, 0
        // Predicated region
        $region33: #{distilbert_embeddings.1} parent=31 // pred_check
          %p184 = pneg %p183
        $region34: #{distilbert_embeddings.1} parent=31 // pred_check_branch
          %186 = sbr.rel (%p184) target = $region36
        $region35: #{distilbert_embeddings.1} parent=31 // pred_region
          %s187 = smul.u32 %s29, 16
          %s188 = sld [smem:[#allocation5 + %s187]]
          %s189 = smul.addr %s188, 16
          %s190 = scalar_lea.hbm %s4, %s189
          // Predicated region
          $region37: #{distilbert_embeddings.1} parent=35 // pred_check
            _
          $region38: #{distilbert_embeddings.1} parent=35 // pred_check_branch
            %192 = sbr.rel target = $region40
          $region39: #{distilbert_embeddings.1} parent=35 // pred_region
            %193 = sst [smem:[#allocation10]] [#allocation9]
            %194 = sst [smem:[#allocation11]] [#allocation8]
          $region40: #{distilbert_embeddings.1} parent=35 // pred_fallthru
            _
          %196 = shalt.err (0)
          %s198 = sshll.u32 [#allocation2], 4
          %s199 = int_to_ptr.vmem [resolvable:$true] %s198
          %201 = dma.hbm_to_vmem [thread:$0]  %s190, 16, %s199, [#allocation3]
          %s202 = sadd.s32 %s187, 1
          %s203 = sld [smem:[#allocation5 + %s202]]
          %s204 = smul.addr %s203, 16
          %s205 = scalar_lea.hbm %s4, %s204
          %s206 = scalar_lea.vmem [#allocation2], 1
          // Predicated region
          $region41: #{distilbert_embeddings.1} parent=35 // pred_check
            _
          $region42: #{distilbert_embeddings.1} parent=35 // pred_check_branch
            %208 = sbr.rel target = $region44
          $region43: #{distilbert_embeddings.1} parent=35 // pred_region
            %209 = sst [smem:[#allocation10]] [#allocation13]
            %210 = sst [smem:[#allocation11]] [#allocation12]
          $region44: #{distilbert_embeddings.1} parent=35 // pred_fallthru
            _
          %212 = shalt.err (0)
          %s214 = sshll.u32 %s206, 4
          %s215 = int_to_ptr.vmem [resolvable:$true] %s214
          %217 = dma.hbm_to_vmem [thread:$0]  %s205, 16, %s215, [#allocation3]
          %s218 = sadd.s32 %s187, 2
          %s219 = sld [smem:[#allocation5 + %s218]]
          %s220 = smul.addr %s219, 16
          %s221 = scalar_lea.hbm %s4, %s220
          %s222 = scalar_lea.vmem [#allocation2], 2
          // Predicated region
          $region45: #{distilbert_embeddings.1} parent=35 // pred_check
            _
          $region46: #{distilbert_embeddings.1} parent=35 // pred_check_branch
            %224 = sbr.rel target = $region48
          $region47: #{distilbert_embeddings.1} parent=35 // pred_region
            %225 = sst [smem:[#allocation10]] [#allocation15]
            %226 = sst [smem:[#allocation11]] [#allocation14]
          $region48: #{distilbert_embeddings.1} parent=35 // pred_fallthru
            _
          %228 = shalt.err (0)
          %s230 = sshll.u32 %s222, 4
          %s231 = int_to_ptr.vmem [resolvable:$true] %s230
          %233 = dma.hbm_to_vmem [thread:$0]  %s221, 16, %s231, [#allocation3]
          %s234 = sadd.s32 %s187, 3
          %s235 = sld [smem:[#allocation5 + %s234]]
          %s236 = smul.addr %s235, 16
          %s237 = scalar_lea.hbm %s4, %s236
          %s238 = scalar_lea.vmem [#allocation2], 3
          // Predicated region
          $region49: #{distilbert_embeddings.1} parent=35 // pred_check
            _
          $region50: #{distilbert_embeddings.1} parent=35 // pred_check_branch
            %240 = sbr.rel target = $region52
          $region51: #{distilbert_embeddings.1} parent=35 // pred_region
            %241 = sst [smem:[#allocation10]] [#allocation17]
            %242 = sst [smem:[#allocation11]] [#allocation16]
          $region52: #{distilbert_embeddings.1} parent=35 // pred_fallthru
            _
          %244 = shalt.err (0)
          %s246 = sshll.u32 %s238, 4
          %s247 = int_to_ptr.vmem [resolvable:$true] %s246
          %249 = dma.hbm_to_vmem [thread:$0]  %s237, 16, %s247, [#allocation3]
          %s250 = sadd.s32 %s187, 4
          %s251 = sld [smem:[#allocation5 + %s250]]
          %s252 = smul.addr %s251, 16
          %s253 = scalar_lea.hbm %s4, %s252
          %s254 = scalar_lea.vmem [#allocation2], 4
          // Predicated region
          $region53: #{distilbert_embeddings.1} parent=35 // pred_check
            _
          $region54: #{distilbert_embeddings.1} parent=35 // pred_check_branch
            %256 = sbr.rel target = $region56
          $region55: #{distilbert_embeddings.1} parent=35 // pred_region
            %257 = sst [smem:[#allocation10]] [#allocation19]
            %258 = sst [smem:[#allocation11]] [#allocation18]
          $region56: #{distilbert_embeddings.1} parent=35 // pred_fallthru
            _
          %260 = shalt.err (0)
          %s262 = sshll.u32 %s254, 4
          %s263 = int_to_ptr.vmem [resolvable:$true] %s262
          %265 = dma.hbm_to_vmem [thread:$0]  %s253, 16, %s263, [#allocation3]
          %s266 = sadd.s32 %s187, 5
          %s267 = sld [smem:[#allocation5 + %s266]]
          %s268 = smul.addr %s267, 16
          %s269 = scalar_lea.hbm %s4, %s268
          %s270 = scalar_lea.vmem [#allocation2], 5
          // Predicated region
          $region57: #{distilbert_embeddings.1} parent=35 // pred_check
            _
          $region58: #{distilbert_embeddings.1} parent=35 // pred_check_branch
            %272 = sbr.rel target = $region60
          $region59: #{distilbert_embeddings.1} parent=35 // pred_region
            %273 = sst [smem:[#allocation10]] [#allocation21]
            %274 = sst [smem:[#allocation11]] [#allocation20]
          $region60: #{distilbert_embeddings.1} parent=35 // pred_fallthru
            _
          %276 = shalt.err (0)
          %s278 = sshll.u32 %s270, 4
          %s279 = int_to_ptr.vmem [resolvable:$true] %s278
          %281 = dma.hbm_to_vmem [thread:$0]  %s269, 16, %s279, [#allocation3]
          %s282 = sadd.s32 %s187, 6
          %s283 = sld [smem:[#allocation5 + %s282]]
          %s284 = smul.addr %s283, 16
          %s285 = scalar_lea.hbm %s4, %s284
          %s286 = scalar_lea.vmem [#allocation2], 6
          // Predicated region
          $region61: #{distilbert_embeddings.1} parent=35 // pred_check
            _
          $region62: #{distilbert_embeddings.1} parent=35 // pred_check_branch
            %288 = sbr.rel target = $region64
          $region63: #{distilbert_embeddings.1} parent=35 // pred_region
            %289 = sst [smem:[#allocation10]] [#allocation23]
            %290 = sst [smem:[#allocation11]] [#allocation22]
          $region64: #{distilbert_embeddings.1} parent=35 // pred_fallthru
            _
          %292 = shalt.err (0)
          %s294 = sshll.u32 %s286, 4
          %s295 = int_to_ptr.vmem [resolvable:$true] %s294
          %297 = dma.hbm_to_vmem [thread:$0]  %s285, 16, %s295, [#allocation3]
          %s298 = sadd.s32 %s187, 7
          %s299 = sld [smem:[#allocation5 + %s298]]
          %s300 = smul.addr %s299, 16
          %s301 = scalar_lea.hbm %s4, %s300
          %s302 = scalar_lea.vmem [#allocation2], 7
          // Predicated region
          $region65: #{distilbert_embeddings.1} parent=35 // pred_check
            _
          $region66: #{distilbert_embeddings.1} parent=35 // pred_check_branch
            %304 = sbr.rel target = $region68
          $region67: #{distilbert_embeddings.1} parent=35 // pred_region
            %305 = sst [smem:[#allocation10]] [#allocation25]
            %306 = sst [smem:[#allocation11]] [#allocation24]
          $region68: #{distilbert_embeddings.1} parent=35 // pred_fallthru
            _
          %308 = shalt.err (0)
          %s310 = sshll.u32 %s302, 4
          %s311 = int_to_ptr.vmem [resolvable:$true] %s310
          %313 = dma.hbm_to_vmem [thread:$0]  %s301, 16, %s311, [#allocation3]
        $region36: #{distilbert_embeddings.1} parent=31 // pred_fallthru
          _
        %s314 = sadd.s32 %s30, 1
        %p315 = scmp.lt.s32.totalorder %s314, 2
        // Predicated region
        $region69: #{distilbert_embeddings.1} parent=31 // pred_check
          %p316 = pneg %p315
        $region70: #{distilbert_embeddings.1} parent=31 // pred_check_branch
          %318 = sbr.rel (%p316) target = $region72
        $region71: #{distilbert_embeddings.1} parent=31 // pred_region
          %s319 = ssub.s32 1, %s182
          %s320 = smul.u32 %s29, 16
          %s321 = smul.u32 %s314, 8
          %s322 = sadd.s32 %s320, %s321
          %s323 = sld [smem:[#allocation5 + %s322]]
          %s324 = smul.addr %s323, 16
          %s325 = scalar_lea.hbm %s4, %s324
          %s326 = smul.u32 %s319, 8
          %s327 = scalar_lea.vmem [#allocation2], %s326
          %s328 = scalar_lea.sflag [#allocation3], %s319
          // Predicated region
          $region73: #{distilbert_embeddings.1} parent=71 // pred_check
            _
          $region74: #{distilbert_embeddings.1} parent=71 // pred_check_branch
            %330 = sbr.rel target = $region76
          $region75: #{distilbert_embeddings.1} parent=71 // pred_region
            %331 = sst [smem:[#allocation10]] [#allocation27]
            %332 = sst [smem:[#allocation11]] [#allocation26]
          $region76: #{distilbert_embeddings.1} parent=71 // pred_fallthru
            _
          %334 = shalt.err (0)
          %s336 = sshll.u32 %s327, 4
          %s337 = int_to_ptr.vmem [resolvable:$true] %s336
          %339 = dma.hbm_to_vmem [thread:$0]  %s325, 16, %s337, %s328
          %s340 = sadd.s32 %s322, 1
          %s341 = sld [smem:[#allocation5 + %s340]]
          %s342 = smul.addr %s341, 16
          %s343 = scalar_lea.hbm %s4, %s342
          %s344 = sadd.s32 1, %s326
          %s345 = scalar_lea.vmem [#allocation2], %s344
          // Predicated region
          $region77: #{distilbert_embeddings.1} parent=71 // pred_check
            _
          $region78: #{distilbert_embeddings.1} parent=71 // pred_check_branch
            %347 = sbr.rel target = $region80
          $region79: #{distilbert_embeddings.1} parent=71 // pred_region
            %348 = sst [smem:[#allocation10]] [#allocation29]
            %349 = sst [smem:[#allocation11]] [#allocation28]
          $region80: #{distilbert_embeddings.1} parent=71 // pred_fallthru
            _
          %351 = shalt.err (0)
          %s353 = sshll.u32 %s345, 4
          %s354 = int_to_ptr.vmem [resolvable:$true] %s353
          %356 = dma.hbm_to_vmem [thread:$0]  %s343, 16, %s354, %s328
          %s357 = sadd.s32 %s322, 2
          %s358 = sld [smem:[#allocation5 + %s357]]
          %s359 = smul.addr %s358, 16
          %s360 = scalar_lea.hbm %s4, %s359
          %s361 = sadd.s32 2, %s326
          %s362 = scalar_lea.vmem [#allocation2], %s361
          // Predicated region
          $region81: #{distilbert_embeddings.1} parent=71 // pred_check
            _
          $region82: #{distilbert_embeddings.1} parent=71 // pred_check_branch
            %364 = sbr.rel target = $region84
          $region83: #{distilbert_embeddings.1} parent=71 // pred_region
            %365 = sst [smem:[#allocation10]] [#allocation31]
            %366 = sst [smem:[#allocation11]] [#allocation30]
          $region84: #{distilbert_embeddings.1} parent=71 // pred_fallthru
            _
          %368 = shalt.err (0)
          %s370 = sshll.u32 %s362, 4
          %s371 = int_to_ptr.vmem [resolvable:$true] %s370
          %373 = dma.hbm_to_vmem [thread:$0]  %s360, 16, %s371, %s328
          %s374 = sadd.s32 %s322, 3
          %s375 = sld [smem:[#allocation5 + %s374]]
          %s376 = smul.addr %s375, 16
          %s377 = scalar_lea.hbm %s4, %s376
          %s378 = sadd.s32 3, %s326
          %s379 = scalar_lea.vmem [#allocation2], %s378
          // Predicated region
          $region85: #{distilbert_embeddings.1} parent=71 // pred_check
            _
          $region86: #{distilbert_embeddings.1} parent=71 // pred_check_branch
            %381 = sbr.rel target = $region88
          $region87: #{distilbert_embeddings.1} parent=71 // pred_region
            %382 = sst [smem:[#allocation10]] [#allocation33]
            %383 = sst [smem:[#allocation11]] [#allocation32]
          $region88: #{distilbert_embeddings.1} parent=71 // pred_fallthru
            _
          %385 = shalt.err (0)
          %s387 = sshll.u32 %s379, 4
          %s388 = int_to_ptr.vmem [resolvable:$true] %s387
          %390 = dma.hbm_to_vmem [thread:$0]  %s377, 16, %s388, %s328
          %s391 = sadd.s32 %s322, 4
          %s392 = sld [smem:[#allocation5 + %s391]]
          %s393 = smul.addr %s392, 16
          %s394 = scalar_lea.hbm %s4, %s393
          %s395 = sadd.s32 4, %s326
          %s396 = scalar_lea.vmem [#allocation2], %s395
          // Predicated region
          $region89: #{distilbert_embeddings.1} parent=71 // pred_check
            _
          $region90: #{distilbert_embeddings.1} parent=71 // pred_check_branch
            %398 = sbr.rel target = $region92
          $region91: #{distilbert_embeddings.1} parent=71 // pred_region
            %399 = sst [smem:[#allocation10]] [#allocation35]
            %400 = sst [smem:[#allocation11]] [#allocation34]
          $region92: #{distilbert_embeddings.1} parent=71 // pred_fallthru
            _
          %402 = shalt.err (0)
          %s404 = sshll.u32 %s396, 4
          %s405 = int_to_ptr.vmem [resolvable:$true] %s404
          %407 = dma.hbm_to_vmem [thread:$0]  %s394, 16, %s405, %s328
          %s408 = sadd.s32 %s322, 5
          %s409 = sld [smem:[#allocation5 + %s408]]
          %s410 = smul.addr %s409, 16
          %s411 = scalar_lea.hbm %s4, %s410
          %s412 = sadd.s32 5, %s326
          %s413 = scalar_lea.vmem [#allocation2], %s412
          // Predicated region
          $region93: #{distilbert_embeddings.1} parent=71 // pred_check
            _
          $region94: #{distilbert_embeddings.1} parent=71 // pred_check_branch
            %415 = sbr.rel target = $region96
          $region95: #{distilbert_embeddings.1} parent=71 // pred_region
            %416 = sst [smem:[#allocation10]] [#allocation37]
            %417 = sst [smem:[#allocation11]] [#allocation36]
          $region96: #{distilbert_embeddings.1} parent=71 // pred_fallthru
            _
          %419 = shalt.err (0)
          %s421 = sshll.u32 %s413, 4
          %s422 = int_to_ptr.vmem [resolvable:$true] %s421
          %424 = dma.hbm_to_vmem [thread:$0]  %s411, 16, %s422, %s328
          %s425 = sadd.s32 %s322, 6
          %s426 = sld [smem:[#allocation5 + %s425]]
          %s427 = smul.addr %s426, 16
          %s428 = scalar_lea.hbm %s4, %s427
          %s429 = sadd.s32 6, %s326
          %s430 = scalar_lea.vmem [#allocation2], %s429
          // Predicated region
          $region97: #{distilbert_embeddings.1} parent=71 // pred_check
            _
          $region98: #{distilbert_embeddings.1} parent=71 // pred_check_branch
            %432 = sbr.rel target = $region100
          $region99: #{distilbert_embeddings.1} parent=71 // pred_region
            %433 = sst [smem:[#allocation10]] [#allocation39]
            %434 = sst [smem:[#allocation11]] [#allocation38]
          $region100: #{distilbert_embeddings.1} parent=71 // pred_fallthru
            _
          %436 = shalt.err (0)
          %s438 = sshll.u32 %s430, 4
          %s439 = int_to_ptr.vmem [resolvable:$true] %s438
          %441 = dma.hbm_to_vmem [thread:$0]  %s428, 16, %s439, %s328
          %s442 = sadd.s32 %s322, 7
          %s443 = sld [smem:[#allocation5 + %s442]]
          %s444 = smul.addr %s443, 16
          %s445 = scalar_lea.hbm %s4, %s444
          %s446 = sadd.s32 7, %s326
          %s447 = scalar_lea.vmem [#allocation2], %s446
          // Predicated region
          $region101: #{distilbert_embeddings.1} parent=71 // pred_check
            _
          $region102: #{distilbert_embeddings.1} parent=71 // pred_check_branch
            %449 = sbr.rel target = $region104
          $region103: #{distilbert_embeddings.1} parent=71 // pred_region
            %450 = sst [smem:[#allocation10]] [#allocation41]
            %451 = sst [smem:[#allocation11]] [#allocation40]
          $region104: #{distilbert_embeddings.1} parent=71 // pred_fallthru
            _
          %453 = shalt.err (0)
          %s455 = sshll.u32 %s447, 4
          %s456 = int_to_ptr.vmem [resolvable:$true] %s455
          %458 = dma.hbm_to_vmem [thread:$0]  %s445, 16, %s456, %s328
        $region72: #{distilbert_embeddings.1} parent=31 // pred_fallthru
          _
        %s459 = smul.u32 %s182, 8
        %s460 = scalar_lea.vmem [#allocation2], %s459
        %s461 = scalar_lea.sflag [#allocation3], %s182
        %s462 = smul.u32 8, 1
        %s463 = sshll.u32 %s462, 4
        %464 = dma.done %s461, %s463
        %s465 = smul.u32 %s30, 8
        %s466 = scalar_lea.vmem %s1, %s465
        %v467 = vld [vmem:[%s466] sm:$0xff]
        %v468 = vld [vmem:[%s460] sm:$0xff]
        %v469 = vld [vmem:[%s2] sm:$0x1]
        %v470 = vld [vmem:[%s3] sm:$0x1]
        %v471 = vadd.f32 %v468, %v467
        %472 = vadd.xlane.f32.xlu0 %v471
        %v473 = vpop.xlane.xlu0 %472
        %v474 = vrcp.pop 128.0
        %v475 = vmul.f32 %v473, %v474
        %v476 = vsub.f32 %v471, %v475
        %v477 = vmul.f32 %v476, %v476
        %478 = vadd.xlane.f32.xlu0 %v477
        %v479 = vpop.xlane.xlu0 %478
        %v480 = vmul.f32 %v479, %v474
        %v481 = vadd.f32 %v480, 1e-12
        %v482 = vrsqrt.pop %v481
        %v483 = vmul.f32 %v476, %v482
        %v485 = vlaneseq
        %v486 = vshrl.u32 %v485, 7
        %v487 = vsub.s32 0, %v486
        %v488 = vrot.slane %v469, %v487
        %v490 = vmul.f32 %v483, %v488
        %v492 = vlaneseq
        %v493 = vshrl.u32 %v492, 7
        %v494 = vsub.s32 0, %v493
        %v495 = vrot.slane %v470, %v494
        %v497 = vadd.f32 %v490, %v495
        %498 = vst [vmem:[%s170] sm:$0xff] %v497
        %s499 = sand.u32 %s110, 1
        %s500 = scalar_lea.sflag [#allocation7], %s499
        %s501 = sand.u32 %s110, 1
        %s502 = smul.addr %s501, 8
        %s503 = scalar_lea.vmem [#allocation6], %s502
        // Predicated region
        $region105: #{distilbert_embeddings.1} parent=31 // pred_check
          %p504 = pneg %p120
        $region106: #{distilbert_embeddings.1} parent=31 // pred_check_branch
          %506 = sbr.rel (%p504) target = $region108
        $region107: #{distilbert_embeddings.1} parent=31 // pred_region
          %s508 = ssub.s32 128, 128
          %509 = vsyncadd %s500, %s508
          %s510 = smul.addr %s29, 2
          %s511 = sadd.s32 %s30, %s510
          %s512 = smul.addr %s511, 128
          %s513 = scalar_lea.hbm %s5, %s512
          %s515 = sshll.u32 %s503, 4
          %s516 = int_to_ptr.vmem [resolvable:$true] %s515
          %518 = dma.vmem_to_hbm [thread:$0]  %s516, 128, %s513, %s500
        $region108: #{distilbert_embeddings.1} parent=31 // pred_fallthru
          _
      $region32: #{distilbert_embeddings.1} parent=5 // pred_fallthru
        _
      %p519 = scmp.le.s32.totalorder 2, %s20
      // Predicated region
      $region109: #{distilbert_embeddings.1} parent=5 // pred_check
        %p520 = pneg %p519
      $region110: #{distilbert_embeddings.1} parent=5 // pred_check_branch
        %522 = sbr.rel (%p520) target = $region112
      $region111: #{distilbert_embeddings.1} parent=5 // pred_region
        %s523 = ssub.s32 %s20, 2
        // Predicated region
        $region113: #{distilbert_embeddings.1} parent=111 // pred_check
          %p524 = pneg %p126
        $region114: #{distilbert_embeddings.1} parent=111 // pred_check_branch
          %526 = sbr.rel (%p524) target = $region116
        $region115: #{distilbert_embeddings.1} parent=111 // pred_region
          %s527 = sand.u32 %s111, 1
          %s528 = scalar_lea.sflag [#allocation7], %s527
          %s529 = sand.u32 %s111, 1
          %s530 = smul.addr %s529, 8
          %s531 = scalar_lea.vmem [#allocation6], %s530
          %532 = dma.done %s528, 128
        $region116: #{distilbert_embeddings.1} parent=111 // pred_fallthru
          _
      $region112: #{distilbert_embeddings.1} parent=5 // pred_fallthru
        _
    $region6: #{distilbert_embeddings.1} parent=1 // loop_footer
      %s24 = sadd.s32 1, %s20
    $region7: #{distilbert_embeddings.1} parent=1 // loop_footer_branch
      %19 = sbr.rel target = $region3
    $region8: #{distilbert_embeddings.1} parent=1 // loop_exit
      _
    %533 = vsyncpa [#allocation7], 1
    %s534 = scalar_lea.sflag [#allocation7], 1
    %535 = vsyncpa %s534, 1
  %536 = vsyncmov [#allocation3]
  %s537 = vpop.sfrf %536
  %p538 = scmp.eq.s32.totalorder %s537, 0
  %p539 = pneg %p538
  %541 = shalt.err (%p539)
  %s542 = scalar_lea.sflag [#allocation3], 1
  %543 = vsyncmov %s542
  %s544 = vpop.sfrf %543
  %p545 = scmp.eq.s32.totalorder %s544, 0
  %p546 = pneg %p545
  %548 = shalt.err (%p546)

</llo_original>
